<compile_context>
chip_gen: v5e
topology: v5e:2x2
jax: 0.10.0
libtpu: 0.0.40
codegen_flags: <defaults>
</compile_context>

<pallas_src>
import functools
import math

import jax
import jax.numpy as jnp
from jax.experimental import pallas as pl
from jax.experimental.pallas import tpu as pltpu


def _cmvn_kernel(x_ref, mean_ref, istd_ref, o_ref, *, norm_var: bool):
    # x_ref:    (TILE_ROWS, LANE) tile of the input
    # mean_ref: (1, LANE) f32   (broadcasts over rows)
    # istd_ref: (1, LANE) f32
    x = x_ref[...].astype(jnp.float32)
    y = x - mean_ref[...]
    if norm_var:
        y = y * istd_ref[...]
    o_ref[...] = y.astype(o_ref.dtype)


def _round_up(n: int, m: int) -> int:
    return -(-n // m) * m


def global_cmvn(x: jax.Array, mean: jax.Array, istd: jax.Array,
                norm_var: bool = True) -> jax.Array:
    """Apply global CMVN normalization.

    Args:
      x:    (B, T, D) input features.
      mean: (D,) mean statistics.
      istd: (D,) inverse standard deviation.
      norm_var: whether to also multiply by istd.
    Returns:
      (B, T, D) normalized features, same dtype as x.
    """
    B, T, D = x.shape
    dtype = x.dtype
    itemsize = jnp.dtype(dtype).itemsize
    rows_total = B * T
    n_elems = rows_total * D

    # --- copy-free 2-D view ------------------------------------------------
    # Prefer folding k frames into the lane axis so the last dim is a multiple
    # of 128 (unmasked vst).  A reshape of a contiguous row-major array is
    # free; no pad/concat/slice is ever emitted.
    k = 128 // math.gcd(D, 128)
    if k > 1 and rows_total % k == 0:
        lane, rows = k * D, rows_total // k          # lane-dense folded view
    else:
        k, lane, rows = 1, D, rows_total             # natural (B*T, D) view
    x2d = x.reshape(rows, lane)

    # Stats tiled across the folded lanes, kept in f32 for compute precision.
    mean_row = jnp.tile(mean.reshape(D).astype(jnp.float32), k).reshape(1, lane)
    istd_row = jnp.tile(istd.reshape(D).astype(jnp.float32), k).reshape(1, lane)

    # --- row-tile sizing -----------------------------------------------------
    # ~4 MiB per tile (multiple of 8 sublanes): HBM-roofline on v5e/v6e/v7x;
    # double-buffered in+out ~= 16 MiB scoped VMEM (limit raised below).
    tile_rows = (4 * 1024 * 1024) // (lane * itemsize)
    tile_rows = max(8, (tile_rows // 8) * 8)
    if rows > 8:
        # Keep >= ~4 grid steps so v7x megacore shards the work and the
        # input/output DMAs overlap compute on all generations.
        cap = max(8, _round_up(-(-rows // 4), 8))
        tile_rows = min(tile_rows, cap)
    else:
        tile_rows = rows   # block == full dim for tiny inputs (legal BlockSpec)

    grid = (pl.cdiv(rows, tile_rows),)   # partial last block masked by Pallas

    kernel = functools.partial(_cmvn_kernel, norm_var=norm_var)
    cost = pl.CostEstimate(
        flops=(2 if norm_var else 1) * n_elems,
        transcendentals=0,
        bytes_accessed=2 * n_elems * itemsize,
    )

    out2d = pl.pallas_call(
        kernel,
        out_shape=jax.ShapeDtypeStruct((rows, lane), dtype),
        grid=grid,
        in_specs=[
            pl.BlockSpec((tile_rows, lane), lambda i: (i, 0)),  # x row chunk
            pl.BlockSpec((1, lane), lambda i: (0, 0)),          # mean (shared)
            pl.BlockSpec((1, lane), lambda i: (0, 0)),          # istd (shared)
        ],
        out_specs=pl.BlockSpec((tile_rows, lane), lambda i: (i, 0)),
        compiler_params=pltpu.CompilerParams(
            dimension_semantics=("parallel",),
            vmem_limit_bytes=32 * 1024 * 1024,
        ),
        cost_estimate=cost,
    )(x2d, mean_row, istd_row)

    return out2d.reshape(B, T, D)


if __name__ == "__main__":
    key = jax.random.PRNGKey(0)

    # Case 1: B=2, T=8, D=32 (folds to 128 lanes exactly, copy-free).
    B, T, D = 2, 8, 32
    kx, km, ks = jax.random.split(key, 3)
    x = jax.random.normal(kx, (B, T, D), dtype=jnp.float32)
    mean = jax.random.normal(km, (D,), dtype=jnp.float32) * 0.5
    istd = 1.0 / (jnp.abs(jax.random.normal(ks, (D,), dtype=jnp.float32)) + 0.5)

    y = global_cmvn(x, mean, istd, norm_var=True)
    jax.block_until_ready(y)
    ref = (x - mean[None, None, :]) * istd[None, None, :]
    assert jnp.allclose(y, ref, atol=1e-5), "norm_var=True mismatch"

    y2 = global_cmvn(x, mean, istd, norm_var=False)
    jax.block_until_ready(y2)
    ref2 = x - mean[None, None, :]
    assert jnp.allclose(y2, ref2, atol=1e-5), "norm_var=False mismatch"

    # Case 2: ragged frame count + wenet-like D=80 (exercises the natural
    # (B*T, D) fallback path with a partial last row-block).
    B2, T2, D2 = 2, 5, 80
    kx2, km2, ks2 = jax.random.split(jax.random.PRNGKey(1), 3)
    x_b = jax.random.normal(kx2, (B2, T2, D2), dtype=jnp.bfloat16)
    mean2 = jax.random.normal(km2, (D2,), dtype=jnp.float32) * 0.5
    istd2 = 1.0 / (jnp.abs(jax.random.normal(ks2, (D2,), dtype=jnp.float32)) + 0.5)

    y3 = global_cmvn(x_b, mean2, istd2, norm_var=True)
    jax.block_until_ready(y3)
    ref3 = ((x_b.astype(jnp.float32) - mean2[None, None, :])
            * istd2[None, None, :]).astype(jnp.bfloat16)
    assert jnp.allclose(y3.astype(jnp.float32), ref3.astype(jnp.float32),
                        atol=3e-2), "ragged bf16 mismatch"

    # Case 3: D=80 with B*T divisible by k=8 (exercises the folded path).
    B3, T3, D3 = 2, 8, 80
    kx3, km3, ks3 = jax.random.split(jax.random.PRNGKey(2), 3)
    x3 = jax.random.normal(kx3, (B3, T3, D3), dtype=jnp.float32)
    mean3 = jax.random.normal(km3, (D3,), dtype=jnp.float32) * 0.5
    istd3 = 1.0 / (jnp.abs(jax.random.normal(ks3, (D3,), dtype=jnp.float32)) + 0.5)

    y4 = global_cmvn(x3, mean3, istd3, norm_var=True)
    jax.block_until_ready(y4)
    ref4 = (x3 - mean3[None, None, :]) * istd3[None, None, :]
    assert jnp.allclose(y4, ref4, atol=1e-5), "folded D=80 mismatch"

    print("KERNEL_OK")
</pallas_src>

<mosaic_0001>
module attributes {stable_mosaic.version = 11 : i64} {
  func.func @_cmvn_kernel(%arg0: i32, %arg1: memref<4x128xf32, #tpu.memory_space<vmem>>, %arg2: memref<1x128xf32, #tpu.memory_space<vmem>>, %arg3: memref<1x128xf32, #tpu.memory_space<vmem>>, %arg4: memref<4x128xf32, #tpu.memory_space<vmem>>) attributes {dimension_semantics = [#tpu.dimension_semantics<parallel>], iteration_bounds = array<i64: 1>, scalar_prefetch = 0 : i64, scratch_operands = 0 : i64, tpu.core_type = #tpu.core_type<tc>, window_params = [{transform_indices = @transform_0, window_bounds = array<i64: 4, 128>}, {pipeline_mode = #tpu.pipeline_mode<synchronous>, transform_indices = @transform_1, window_bounds = array<i64: 1, 128>}, {pipeline_mode = #tpu.pipeline_mode<synchronous>, transform_indices = @transform_2, window_bounds = array<i64: 1, 128>}, {transform_indices = @transform_3, window_bounds = array<i64: 4, 128>}]} {
    %c0 = arith.constant 0 : index
    %c0_0 = arith.constant 0 : index
    %0 = vector.load %arg1[%c0, %c0_0] : memref<4x128xf32, #tpu.memory_space<vmem>>, vector<4x128xf32>
    %c0_1 = arith.constant 0 : index
    %c0_2 = arith.constant 0 : index
    %1 = vector.load %arg2[%c0_1, %c0_2] : memref<1x128xf32, #tpu.memory_space<vmem>>, vector<1x128xf32>
    %2 = vector.broadcast %1 : vector<1x128xf32> to vector<4x128xf32>
    %3 = arith.subf %0, %2 : vector<4x128xf32>
    %c0_3 = arith.constant 0 : index
    %c0_4 = arith.constant 0 : index
    %4 = vector.load %arg3[%c0_3, %c0_4] : memref<1x128xf32, #tpu.memory_space<vmem>>, vector<1x128xf32>
    %5 = vector.broadcast %4 : vector<1x128xf32> to vector<4x128xf32>
    %6 = arith.mulf %3, %5 : vector<4x128xf32>
    %c0_5 = arith.constant 0 : index
    %c0_6 = arith.constant 0 : index
    %7 = vector.load %arg4[%c0_5, %c0_6] : memref<4x128xf32, #tpu.memory_space<vmem>>, vector<4x128xf32>
    tpu.vector_store %arg4[%c0_5, %c0_6], %6 {strides = array<i32>} : memref<4x128xf32, #tpu.memory_space<vmem>>, vector<4x128xf32>,
    return
  }
  func.func @transform_0(%arg0: i32) -> (i32, i32) {
    %c0_i32 = arith.constant 0 : i32
    %c0_i32_0 = arith.constant 0 : i32
    return %arg0, %c0_i32 : i32, i32
  }
  func.func @transform_1(%arg0: i32) -> (i32, i32) {
    %c0_i32 = arith.constant 0 : i32
    %c0_i32_0 = arith.constant 0 : i32
    %c0_i32_1 = arith.constant 0 : i32
    return %c0_i32, %c0_i32_0 : i32, i32
  }
  func.func @transform_2(%arg0: i32) -> (i32, i32) {
    %c0_i32 = arith.constant 0 : i32
    %c0_i32_0 = arith.constant 0 : i32
    %c0_i32_1 = arith.constant 0 : i32
    return %c0_i32, %c0_i32_0 : i32, i32
  }
  func.func @transform_3(%arg0: i32) -> (i32, i32) {
    %c0_i32 = arith.constant 0 : i32
    %c0_i32_0 = arith.constant 0 : i32
    return %arg0, %c0_i32 : i32, i32
  }
}

</mosaic_0001>

<llo_original>
// kernel: tpu_custom_call.1
$region0: #{tpu_custom_call.1}
  #allocation0 [shape = 'u32[]', space=smem, size = 0x4, offset = 0x4, fixed_abs, tag = 'smem constant byte address 0x4 - core index']
  #allocation1 [shape = 'u32[72,128]{1,0:T(1,128)}', space=vmem, size = 0x9000, scoped, tag = 'internal scratch']
  %s0 = inlined_call_operand.hbm [shape: f32[4,128], index: 0, kind: input, shape index: {}]
  %s1 = inlined_call_operand.hbm [shape: f32[1,128], index: 1, kind: input, shape index: {}]
  %s2 = inlined_call_operand.vmem [shape: f32[1,128], index: 2, kind: input, shape index: {}]
  %s3 = inlined_call_operand.hbm [shape: f32[4,128], index: 3, kind: output, shape index: {}]
  %s4 = sld [smem:[#allocation0]]
  $region30: #{tpu_custom_call.1} parent=0
    _
  %s6 = ssub.s32 1, %s4
  %s7 = scalar_select 0, %s6, %s4
  $region1: #{tpu_custom_call.1} parent=0
    #allocation2 [shape = 'u8[2048]{0}', space=vmem, size = 0x800, scoped, tag = 'input window, operand 0, single buffered']
    #allocation3 [shape = 's32[1]{0}', space=sflag, size = 0x4, scoped, tag = 'scoped memory for tpu_custom_call.1']
    #allocation4 [shape = 's32[1]{0}', space=sflag, size = 0x4, scoped, tag = 'scoped memory for tpu_custom_call.1']
    #allocation5 [shape = 'u8[512]{0}', space=vmem, size = 0x400, scoped, tag = 'input window, operand 1, single buffered']
    #allocation6 [shape = 's32[1]{0}', space=sflag, size = 0x4, scoped, tag = 'scoped memory for tpu_custom_call.1']
    #allocation7 [shape = 'u8[2048]{0}', space=vmem, size = 0x800, scoped, tag = 'output window, operand 0, single buffered']
    %8 = vsyncpa [#allocation3], 0
    %9 = vsyncpa [#allocation6], 0
    %10 = vsyncpa [#allocation4], 0
    // Predicated region
    $region2: #{tpu_custom_call.1} parent=1 // pred_check
      _
    $region3: #{tpu_custom_call.1} parent=1 // pred_check_branch
      %12 = sbr.rel (0) target = $region5
    $region4: #{tpu_custom_call.1} parent=1 // pred_region
      %14 = vsyncadd [#allocation3], 0
      %s16 = sshll.u32 %s0, 4
      %s17 = int_to_ptr.hbm [resolvable:$true] %s16
      %s18 = sshll.u32 [#allocation2], 4
      %s19 = int_to_ptr.vmem [resolvable:$true] %s18
      %21 = dma.hbm_to_vmem [thread:$0]  %s17, 64, %s19, [#allocation3]
    $region5: #{tpu_custom_call.1} parent=1 // pred_fallthru
      _
    // Predicated region
    $region6: #{tpu_custom_call.1} parent=1 // pred_check
      _
    $region7: #{tpu_custom_call.1} parent=1 // pred_check_branch
      %23 = sbr.rel (0) target = $region9
    $region8: #{tpu_custom_call.1} parent=1 // pred_region
      %25 = vsyncadd [#allocation6], 0
      %s27 = sshll.u32 %s1, 4
      %s28 = int_to_ptr.hbm [resolvable:$true] %s27
      %s29 = sshll.u32 [#allocation5], 4
      %s30 = int_to_ptr.vmem [resolvable:$true] %s29
      %32 = dma.hbm_to_vmem [thread:$0]  %s28, 16, %s30, [#allocation6]
    $region9: #{tpu_custom_call.1} parent=1 // pred_fallthru
      _
    // Predicated region
    $region10: #{tpu_custom_call.1} parent=1 // pred_check
      _
    $region11: #{tpu_custom_call.1} parent=1 // pred_check_branch
      %34 = sbr.rel (0) target = $region13
    $region12: #{tpu_custom_call.1} parent=1 // pred_region
      _
    $region13: #{tpu_custom_call.1} parent=1 // pred_fallthru
      _
    // Predicated region
    $region14: #{tpu_custom_call.1} parent=1 // pred_check
      _
    $region15: #{tpu_custom_call.1} parent=1 // pred_check_branch
      %36 = sbr.rel (0) target = $region17
    $region16: #{tpu_custom_call.1} parent=1 // pred_region
      %38 = dma.done [#allocation3], 64
    $region17: #{tpu_custom_call.1} parent=1 // pred_fallthru
      _
    // Predicated region
    $region18: #{tpu_custom_call.1} parent=1 // pred_check
      _
    $region19: #{tpu_custom_call.1} parent=1 // pred_check_branch
      %40 = sbr.rel (0) target = $region21
    $region20: #{tpu_custom_call.1} parent=1 // pred_region
      %42 = dma.done [#allocation6], 16
    $region21: #{tpu_custom_call.1} parent=1 // pred_fallthru
      _
    %v43 = vld [vmem:[#allocation2] sm:$0xf]
    %v44 = vld [vmem:[#allocation5] sm:$0x1]
    %v46 = vperm.slane %v44, 0
    %v48 = vsub.f32 %v43, %v46
    %v49 = vld [vmem:[%s2] sm:$0x1]
    %v51 = vperm.slane %v49, 0
    %v53 = vmul.f32 %v48, %v51
    %54 = vst [vmem:[#allocation7] sm:$0xf] %v53
    // Predicated region
    $region22: #{tpu_custom_call.1} parent=1 // pred_check
      _
    $region23: #{tpu_custom_call.1} parent=1 // pred_check_branch
      %56 = sbr.rel (0) target = $region25
    $region24: #{tpu_custom_call.1} parent=1 // pred_region
      %58 = vsyncadd [#allocation4], 0
      %s60 = sshll.u32 [#allocation7], 4
      %s61 = int_to_ptr.vmem [resolvable:$true] %s60
      %s62 = sshll.u32 %s3, 4
      %s63 = int_to_ptr.hbm [resolvable:$true] %s62
      %65 = dma.vmem_to_hbm [thread:$0]  %s61, 64, %s63, [#allocation4]
    $region25: #{tpu_custom_call.1} parent=1 // pred_fallthru
      _
    // Predicated region
    $region26: #{tpu_custom_call.1} parent=1 // pred_check
      _
    $region27: #{tpu_custom_call.1} parent=1 // pred_check_branch
      %67 = sbr.rel (0) target = $region29
    $region28: #{tpu_custom_call.1} parent=1 // pred_region
      %69 = dma.done [#allocation4], 64
    $region29: #{tpu_custom_call.1} parent=1 // pred_fallthru
      _
    %70 = vsyncpa [#allocation3], 1
    %71 = vsyncpa [#allocation6], 1
    %72 = vsyncpa [#allocation4], 1

</llo_original>
